<compile_context>
chip_gen: v6e
topology: v6e:2x2x1
jax: 0.10.0
libtpu: 0.0.40
codegen_flags: <defaults>
</compile_context>

<pallas_src>
import jax
import jax.numpy as jnp
from jax import lax
from jax.experimental import pallas as pl
from jax.experimental.pallas import tpu as pltpu

# Fixed constants from the module's __init__ (n_kernels / mul_factor are unused
# by the reference forward; the multiplier list is hard-coded there).
BANDWIDTH_MULTIPLIERS = (0.1, 0.5, 1.0, 1.5, 2.0)


def _rbf_tile_kernel(scale_ref, sqi_ref, sqj_ref, xi_ref, xj_ref, o_ref):
    """Compute one (TM, TN) tile of sum_k exp(-L2 / (bw * m_k))."""
    xi = xi_ref[...]                                   # (TM, D) f32
    xj = xj_ref[...]                                   # (TN, D) f32

    # Gram tile on the MXU; contract last dim of BOTH operands (no transpose).
    # Keep f32 inputs + f32 accumulation: the matmul is tiny (K = D) and fully
    # hidden, and bf16 would amplify cancellation in l2 near the diagonal.
    gram = lax.dot_general(
        xi, xj,
        dimension_numbers=(((1,), (1,)), ((), ())),
        preferred_element_type=jnp.float32)            # (TM, TN)

    # ||xi||^2 + ||xj||^2 - 2 <xi, xj>, clamped against tiny negatives.
    l2 = sqi_ref[...] + sqj_ref[...] - 2.0 * gram      # (TM,1)+(1,TN) broadcast
    l2 = jnp.maximum(l2, 0.0)

    # Single EUP op per element: w = exp(-l2 / (6*bw)).  The five bandwidth
    # multipliers m = {0.1, 0.5, 1.0, 1.5, 2.0} give 6/m = {60, 12, 6, 4, 3},
    # all integers, so every Gaussian is an integer power of w.
    w = jnp.exp(l2 * scale_ref[0])                     # scale = -1 / (6*bw)
    w2 = w * w
    w3 = w2 * w                                        # m = 2.0
    w4 = w2 * w2                                       # m = 1.5
    w6 = w3 * w3                                       # m = 1.0
    w12 = w6 * w6                                      # m = 0.5
    w24 = w12 * w12
    w48 = w24 * w24
    w60 = w48 * w12                                    # m = 0.1

    o_ref[...] = (w3 + w4 + w6 + w12 + w60).astype(o_ref.dtype)


def rbf(x, bandwidth=None, *, tile_m=512, tile_n=1024, out_dtype=jnp.float32):
    """x: (N, D) float -> (N, N) summed-Gaussian kernel matrix."""
    n, d = x.shape
    xf = x.astype(jnp.float32)

    # --- O(N*D) prologue in plain JAX -------------------------------------
    # Center the data: all pairwise distances (hence the bandwidth and the
    # output) are translation invariant, and centering removes cancellation
    # in the Gram-trick l2 and the analytic bandwidth for offset-heavy data.
    xf = xf - jnp.mean(xf, axis=0, keepdims=True)

    sq = jnp.sum(xf * xf, axis=-1)                     # (N,) row squared norms
    if bandwidth is None:
        # sum_{i,j} ||xi - xj||^2 = 2*N*sum_i ||xi||^2 - 2*||sum_i xi||^2
        col_sum = jnp.sum(xf, axis=0)
        total_l2 = 2.0 * n * jnp.sum(sq) - 2.0 * jnp.dot(col_sum, col_sum)
        bw = total_l2 / jnp.float32(n * n - n)
    else:
        bw = jnp.float32(bandwidth)
    # The only scale the kernel needs: all multipliers are integer powers of
    # exp(-l2 / (6*bw)).
    scale = jnp.reshape(-1.0 / (6.0 * bw), (1,)).astype(jnp.float32)

    sq_col = sq.reshape(n, 1)                          # (N, 1)
    sq_row = sq.reshape(1, n)                          # (1, N)

    # --- tiled (N, N) pass --------------------------------------------------
    tm = n if n <= tile_m else tile_m                  # tm multiple of 8 (or full)
    tn = n if n <= tile_n else tile_n                  # tn multiple of 128 (or full)
    grid = (pl.cdiv(n, tm), pl.cdiv(n, tn))

    return pl.pallas_call(
        _rbf_tile_kernel,
        out_shape=jax.ShapeDtypeStruct((n, n), out_dtype),
        grid_spec=pltpu.PrefetchScalarGridSpec(
            num_scalar_prefetch=0,
            grid=grid,
            in_specs=[
                pl.BlockSpec(memory_space=pltpu.MemorySpace.SMEM),   # scale (1,)
                pl.BlockSpec((tm, 1), lambda i, j: (i, 0)),          # row norms
                pl.BlockSpec((1, tn), lambda i, j: (0, j)),          # col norms
                pl.BlockSpec((tm, d), lambda i, j: (i, 0)),          # X row tile
                pl.BlockSpec((tn, d), lambda i, j: (j, 0)),          # X col tile
            ],
            out_specs=pl.BlockSpec((tm, tn), lambda i, j: (i, j)),
        ),
        compiler_params=pltpu.CompilerParams(
            dimension_semantics=("parallel", "parallel"),
            vmem_limit_bytes=32 * 1024 * 1024),
    )(scale, sq_col, sq_row, xf, xf)
    # TODO(synk): optional upper-triangle-only grid + mirrored writeback (only
    # pays off once the consumer is fused or the output is narrowed to bf16,
    # since the full (N,N) HBM write stream is otherwise unchanged).


def _rbf_reference(x, bandwidth=None):
    """Pure-JAX reference (explicit pairwise differences, 5 separate exps)."""
    xf = x.astype(jnp.float32)
    diff = xf[:, None, :] - xf[None, :, :]
    l2 = jnp.sum(diff * diff, axis=-1)
    n = xf.shape[0]
    if bandwidth is None:
        bw = jnp.sum(l2) / (n * n - n)
    else:
        bw = jnp.float32(bandwidth)
    mults = jnp.asarray(BANDWIDTH_MULTIPLIERS, jnp.float32)
    return jnp.sum(jnp.exp(-l2[None, ...] / (bw * mults)[:, None, None]), axis=0)


if __name__ == "__main__":
    key = jax.random.PRNGKey(0)
    k1, k2 = jax.random.split(key)

    # Small shape implied by the module: N samples x D features.
    x_small = jax.random.normal(k1, (8, 32), dtype=jnp.float32)
    out_small = rbf(x_small)
    jax.block_until_ready(out_small)
    ref_small = _rbf_reference(x_small)
    assert out_small.shape == (8, 8)
    assert jnp.allclose(out_small, ref_small, atol=5e-4, rtol=1e-3), (
        "small max err", float(jnp.max(jnp.abs(out_small - ref_small))))

    # Larger shape exercising the 2D (row-tile, col-tile) grid with ragged
    # edge tiles: grid = (3, 2) at tile 512x1024.
    x_big = jax.random.normal(k2, (1536, 32), dtype=jnp.float32) + 3.0
    out_big = rbf(x_big)
    jax.block_until_ready(out_big)
    ref_big = _rbf_reference(x_big)
    assert out_big.shape == (1536, 1536)
    assert jnp.allclose(out_big, ref_big, atol=5e-4, rtol=1e-3), (
        "big max err", float(jnp.max(jnp.abs(out_big - ref_big))))

    # Explicit-bandwidth branch (self.bandwidth is not None).
    out_bw = rbf(x_small, bandwidth=2.5)
    jax.block_until_ready(out_bw)
    ref_bw = _rbf_reference(x_small, bandwidth=2.5)
    assert jnp.allclose(out_bw, ref_bw, atol=5e-4, rtol=1e-3), (
        "bw max err", float(jnp.max(jnp.abs(out_bw - ref_bw))))

    print("KERNEL_OK")
</pallas_src>

<mosaic_0001>
module attributes {stable_mosaic.version = 11 : i64} {
  func.func @_rbf_tile_kernel(%arg0: i32, %arg1: i32, %arg2: memref<1xf32, #tpu.memory_space<smem>>, %arg3: memref<8x1xf32, #tpu.memory_space<vmem>>, %arg4: memref<1x8xf32, #tpu.memory_space<vmem>>, %arg5: memref<8x32xf32, #tpu.memory_space<vmem>>, %arg6: memref<8x32xf32, #tpu.memory_space<vmem>>, %arg7: memref<8x8xf32, #tpu.memory_space<vmem>>) attributes {dimension_semantics = [#tpu.dimension_semantics<parallel>, #tpu.dimension_semantics<parallel>], iteration_bounds = array<i64: 1, 1>, scalar_prefetch = 0 : i64, scratch_operands = 0 : i64, tpu.core_type = #tpu.core_type<tc>, window_params = [{transform_indices = @transform_0, window_bounds = array<i64: 1>}, {transform_indices = @transform_1, window_bounds = array<i64: 8, 1>}, {transform_indices = @transform_2, window_bounds = array<i64: 1, 8>}, {transform_indices = @transform_3, window_bounds = array<i64: 8, 32>}, {transform_indices = @transform_4, window_bounds = array<i64: 8, 32>}, {transform_indices = @transform_5, window_bounds = array<i64: 8, 8>}]} {
    %c0 = arith.constant 0 : index
    %c0_0 = arith.constant 0 : index
    %0 = vector.load %arg5[%c0, %c0_0] : memref<8x32xf32, #tpu.memory_space<vmem>>, vector<8x32xf32>
    %c0_1 = arith.constant 0 : index
    %c0_2 = arith.constant 0 : index
    %1 = vector.load %arg6[%c0_1, %c0_2] : memref<8x32xf32, #tpu.memory_space<vmem>>, vector<8x32xf32>
    %cst = arith.constant dense<0.000000e+00> : vector<8x8xf32>
    %2 = tpu.matmul %0, %1, %cst {dimension_numbers = #tpu.dot_dimension_numbers<[1], [1], [0], [0], [0, 0, 1, 0], [], []>} : vector<8x32xf32>, vector<8x32xf32>, vector<8x8xf32> -> vector<8x8xf32>
    %c0_3 = arith.constant 0 : index
    %c0_4 = arith.constant 0 : index
    %3 = vector.load %arg3[%c0_3, %c0_4] : memref<8x1xf32, #tpu.memory_space<vmem>>, vector<8x1xf32>
    %c0_5 = arith.constant 0 : index
    %c0_6 = arith.constant 0 : index
    %4 = vector.load %arg4[%c0_5, %c0_6] : memref<1x8xf32, #tpu.memory_space<vmem>>, vector<1x8xf32>
    %5 = vector.broadcast %3 : vector<8x1xf32> to vector<8x8xf32>
    %6 = vector.broadcast %4 : vector<1x8xf32> to vector<8x8xf32>
    %7 = arith.addf %5, %6 : vector<8x8xf32>
    %cst_7 = arith.constant 2.000000e+00 : f32
    %8 = vector.broadcast %cst_7 : f32 to vector<8x8xf32>
    %9 = arith.mulf %8, %2 : vector<8x8xf32>
    %10 = arith.subf %7, %9 : vector<8x8xf32>
    %cst_8 = arith.constant 0.000000e+00 : f32
    %11 = vector.broadcast %cst_8 : f32 to vector<8x8xf32>
    %12 = arith.maximumf %10, %11 : vector<8x8xf32>
    %c0_9 = arith.constant 0 : index
    %13 = memref.load %arg2[%c0_9] : memref<1xf32, #tpu.memory_space<smem>>
    %14 = vector.broadcast %13 : f32 to vector<8x8xf32>
    %15 = arith.mulf %12, %14 : vector<8x8xf32>
    %16 = math.exp %15 : vector<8x8xf32>
    %17 = arith.mulf %16, %16 : vector<8x8xf32>
    %18 = arith.mulf %17, %16 : vector<8x8xf32>
    %19 = arith.mulf %17, %17 : vector<8x8xf32>
    %20 = arith.mulf %18, %18 : vector<8x8xf32>
    %21 = arith.mulf %20, %20 : vector<8x8xf32>
    %22 = arith.mulf %21, %21 : vector<8x8xf32>
    %23 = arith.mulf %22, %22 : vector<8x8xf32>
    %24 = arith.mulf %23, %21 : vector<8x8xf32>
    %25 = arith.addf %18, %19 : vector<8x8xf32>
    %26 = arith.addf %25, %20 : vector<8x8xf32>
    %27 = arith.addf %26, %21 : vector<8x8xf32>
    %28 = arith.addf %27, %24 : vector<8x8xf32>
    %c0_10 = arith.constant 0 : index
    %c0_11 = arith.constant 0 : index
    %29 = vector.load %arg7[%c0_10, %c0_11] : memref<8x8xf32, #tpu.memory_space<vmem>>, vector<8x8xf32>
    tpu.vector_store %arg7[%c0_10, %c0_11], %28 {strides = array<i32>} : memref<8x8xf32, #tpu.memory_space<vmem>>, vector<8x8xf32>,
    return
  }
  func.func @transform_0(%arg0: i32, %arg1: i32) -> i32 {
    %c0_i32 = arith.constant 0 : i32
    %c0_i32_0 = arith.constant 0 : i32
    return %c0_i32 : i32
  }
  func.func @transform_1(%arg0: i32, %arg1: i32) -> (i32, i32) {
    %c0_i32 = arith.constant 0 : i32
    %c0_i32_0 = arith.constant 0 : i32
    return %arg0, %c0_i32 : i32, i32
  }
  func.func @transform_2(%arg0: i32, %arg1: i32) -> (i32, i32) {
    %c0_i32 = arith.constant 0 : i32
    %c0_i32_0 = arith.constant 0 : i32
    return %c0_i32, %arg1 : i32, i32
  }
  func.func @transform_3(%arg0: i32, %arg1: i32) -> (i32, i32) {
    %c0_i32 = arith.constant 0 : i32
    %c0_i32_0 = arith.constant 0 : i32
    return %arg0, %c0_i32 : i32, i32
  }
  func.func @transform_4(%arg0: i32, %arg1: i32) -> (i32, i32) {
    %c0_i32 = arith.constant 0 : i32
    %c0_i32_0 = arith.constant 0 : i32
    return %arg1, %c0_i32 : i32, i32
  }
  func.func @transform_5(%arg0: i32, %arg1: i32) -> (i32, i32) {
    %c0_i32 = arith.constant 0 : i32
    return %arg0, %arg1 : i32, i32
  }
}

</mosaic_0001>

<llo_original>
// kernel: tpu_custom_call.1
$region0: #{tpu_custom_call.1}
  #allocation0 [shape = 'u32[]', space=smem, size = 0x4, offset = 0x4, fixed_abs, tag = 'smem constant byte address 0x4 - core index']
  #allocation1 [shape = 'u32[144,128]{1,0:T(1,128)}', space=vmem, size = 0x12000, scoped, tag = 'internal scratch']
  #allocation2 [shape = 'f32[1]{0:T(128)S(6)}', space=smem, size = 0x200, scoped, tag = 'scoped memory for tpu_custom_call.1']
  %s0 = inlined_call_operand.<no memory space> [shape: f32[1], index: 0, kind: input, shape index: {}]
  %s1 = inlined_call_operand.vmem [shape: f32[8,1], index: 1, kind: input, shape index: {}]
  %s2 = inlined_call_operand.hbm [shape: f32[1,8], index: 2, kind: input, shape index: {}]
  %s3 = inlined_call_operand.vmem [shape: f32[8,32], index: 3, kind: input, shape index: {}]
  %s4 = inlined_call_operand.vmem [shape: f32[8,32], index: 4, kind: input, shape index: {}]
  %s5 = inlined_call_operand.hbm [shape: f32[8,8], index: 5, kind: output, shape index: {}]
  %s6 = sld [smem:[#allocation0]]
  $region34: #{tpu_custom_call.1} parent=0
    _
  %s8 = ssub.s32 1, %s6
  %s9 = scalar_select 0, %s8, %s6
  %10 = sst [smem:[#allocation2]] %s0
  $region1: #{tpu_custom_call.1} parent=0
    #allocation3 [shape = 'u8[512]{0}', space=vmem, size = 0x400, scoped, tag = 'input window, operand 2, single buffered']
    #allocation4 [shape = 's32[1]{0}', space=sflag, size = 0x4, scoped, tag = 'scoped memory for tpu_custom_call.1']
    #allocation5 [shape = 's32[1]{0}', space=sflag, size = 0x4, scoped, tag = 'scoped memory for tpu_custom_call.1']
    #allocation6 [shape = 'u8[4096]{0}', space=vmem, size = 0x1000, scoped, tag = 'output window, operand 0, single buffered']
    %11 = vsyncpa [#allocation4], 0
    %12 = vsyncpa [#allocation5], 0
    // Predicated region
    $region2: #{tpu_custom_call.1} parent=1 // pred_check
      _
    $region3: #{tpu_custom_call.1} parent=1 // pred_check_branch
      %14 = sbr.rel (0) target = $region5
    $region4: #{tpu_custom_call.1} parent=1 // pred_region
      _
    $region5: #{tpu_custom_call.1} parent=1 // pred_fallthru
      _
    // Predicated region
    $region6: #{tpu_custom_call.1} parent=1 // pred_check
      _
    $region7: #{tpu_custom_call.1} parent=1 // pred_check_branch
      %16 = sbr.rel (0) target = $region9
    $region8: #{tpu_custom_call.1} parent=1 // pred_region
      _
    $region9: #{tpu_custom_call.1} parent=1 // pred_fallthru
      _
    // Predicated region
    $region10: #{tpu_custom_call.1} parent=1 // pred_check
      _
    $region11: #{tpu_custom_call.1} parent=1 // pred_check_branch
      %18 = sbr.rel (0) target = $region13
    $region12: #{tpu_custom_call.1} parent=1 // pred_region
      %s20 = ssub.s32 16, 16
      %21 = vsyncadd [#allocation4], %s20
      %s23 = sshll.u32 [#allocation3], 4
      %s24 = int_to_ptr.vmem [resolvable:$true] %s23
      %26 = dma.hbm_to_vmem [thread:$0]  %s2, 16, %s24, [#allocation4]
    $region13: #{tpu_custom_call.1} parent=1 // pred_fallthru
      _
    // Predicated region
    $region14: #{tpu_custom_call.1} parent=1 // pred_check
      _
    $region15: #{tpu_custom_call.1} parent=1 // pred_check_branch
      %28 = sbr.rel (0) target = $region17
    $region16: #{tpu_custom_call.1} parent=1 // pred_region
      _
    $region17: #{tpu_custom_call.1} parent=1 // pred_fallthru
      _
    // Predicated region
    $region18: #{tpu_custom_call.1} parent=1 // pred_check
      _
    $region19: #{tpu_custom_call.1} parent=1 // pred_check_branch
      %30 = sbr.rel (0) target = $region21
    $region20: #{tpu_custom_call.1} parent=1 // pred_region
      _
    $region21: #{tpu_custom_call.1} parent=1 // pred_fallthru
      _
    // Predicated region
    $region22: #{tpu_custom_call.1} parent=1 // pred_check
      _
    $region23: #{tpu_custom_call.1} parent=1 // pred_check_branch
      %32 = sbr.rel (0) target = $region25
    $region24: #{tpu_custom_call.1} parent=1 // pred_region
      %33 = dma.done [#allocation4], 16
    $region25: #{tpu_custom_call.1} parent=1 // pred_fallthru
      _
    %v34 = vld [vmem:[%s3] sm:$0xff]
    %v35 = vld [vmem:[%s4] sm:$0xff]
    %vm36 = vcmask 261120
    %v38 = vsel %vm36, %v34, 0
    %v41 = vsel %vm36, %v35, 0
    %43 = vmatprep.subr.mxu0 0.0
    %44 = vmatpush1.xpose.msra.mxu0 0.0
    %45 = vmatprep.subr.mxu0 0.0
    %46 = vmatpush1.xpose.msra.mxu0 0.0
    %47 = vmatprep.subr.mxu0 0.0
    %48 = vmatpush1.xpose.msra.mxu0 0.0
    %49 = vmatprep.subr.mxu0 0.0
    %50 = vmatpush1.xpose.msra.mxu0 0.0
    %51 = vmatprep.subr.mxu0 0.0
    %52 = vmatpush1.xpose.msra.mxu0 0.0
    %53 = vmatprep.subr.mxu0 0.0
    %54 = vmatpush1.xpose.msra.mxu0 0.0
    %55 = vmatprep.subr.mxu0 0.0
    %56 = vmatpush1.xpose.msra.mxu0 0.0
    %57 = vmatprep.subr.mxu0 0.0
    %58 = vmatpush1.xpose.msra.mxu0 0.0
    %59 = vmatprep.subr.mxu0 0.0
    %60 = vmatpush1.xpose.msra.mxu0 0.0
    %61 = vmatprep.subr.mxu0 0.0
    %62 = vmatpush1.xpose.msra.mxu0 0.0
    %63 = vmatprep.subr.mxu0 0.0
    %64 = vmatpush1.xpose.msra.mxu0 0.0
    %65 = vmatprep.subr.mxu0 0.0
    %66 = vmatpush1.xpose.msra.mxu0 0.0
    %67 = vmatprep.subr.mxu0 0.0
    %68 = vmatpush1.xpose.msra.mxu0 0.0
    %69 = vmatprep.subr.mxu0 0.0
    %70 = vmatpush1.xpose.msra.mxu0 0.0
    %71 = vmatprep.subr.mxu0 0.0
    %72 = vmatpush1.xpose.msra.mxu0 0.0
    %73 = vmatprep.subr.mxu0 0.0
    %74 = vmatpush1.xpose.msra.mxu0 %v41
    %75 = vmatprep.subr.mxu0 0.0
    %76 = vmatpush2.xpose.msra.mxu0 0.0
    %77 = vmatprep.subr.mxu0 0.0
    %78 = vmatpush2.xpose.msra.mxu0 0.0
    %79 = vmatprep.subr.mxu0 0.0
    %80 = vmatpush2.xpose.msra.mxu0 0.0
    %81 = vmatprep.subr.mxu0 0.0
    %82 = vmatpush2.xpose.msra.mxu0 0.0
    %83 = vmatprep.subr.mxu0 0.0
    %84 = vmatpush2.xpose.msra.mxu0 0.0
    %85 = vmatprep.subr.mxu0 0.0
    %86 = vmatpush2.xpose.msra.mxu0 0.0
    %87 = vmatprep.subr.mxu0 0.0
    %88 = vmatpush2.xpose.msra.mxu0 0.0
    %89 = vmatprep.subr.mxu0 0.0
    %90 = vmatpush2.xpose.msra.mxu0 0.0
    %91 = vmatprep.subr.mxu0 0.0
    %92 = vmatpush2.xpose.msra.mxu0 0.0
    %93 = vmatprep.subr.mxu0 0.0
    %94 = vmatpush2.xpose.msra.mxu0 0.0
    %95 = vmatprep.subr.mxu0 0.0
    %96 = vmatpush2.xpose.msra.mxu0 0.0
    %97 = vmatprep.subr.mxu0 0.0
    %98 = vmatpush2.xpose.msra.mxu0 0.0
    %99 = vmatprep.subr.mxu0 0.0
    %100 = vmatpush2.xpose.msra.mxu0 0.0
    %101 = vmatprep.subr.mxu0 0.0
    %102 = vmatpush2.xpose.msra.mxu0 0.0
    %103 = vmatprep.subr.mxu0 0.0
    %104 = vmatpush2.xpose.msra.mxu0 0.0
    %105 = vmatprep.subr.mxu0 0.0
    %106 = vmatpush2.xpose.msra.mxu0 0.0
    %107 = vmatprep.mubr.f32.mxu0 0.0
    %108 = vmatmul.mubr.f32.gmra.mxu0 %v38
    %v109 = vpop.f32.mrf.mxu0
    %v110 = vadd.f32 0.0, %v109
    %v111 = vpop.f32.mrf.mxu0
    %112 = vdwg.mxu0
    %v113 = vld [vmem:[%s1] sm:$0xff]
    %v114 = vld [vmem:[#allocation3] sm:$0x1]
    %116 = vset.pattern.permute.xlu0 0
    %117 = vperm.xlu0 %116, %v113
    %v118 = vpop.permute.xlu0 %117
    %v121 = vlaneseq
    %v122 = vshrl.u32 %v121, 7
    %v123 = vsub.s32 0, %v122
    %v124 = vrot.slane %v114, %v123
    %v126 = vadd.f32 %v118, %v124
    %v127 = vmul.f32 %v110, 2.0
    %v128 = vsub.f32 %v126, %v127
    %v129 = vmax.f32 %v128, 0.0
    %s130 = sld [smem:[#allocation2]]
    %v131 = vstv %s130
    %v132 = vmul.f32 %v129, %v131
    %v133 = vmul.f32 %v132, 1.442695
    %v134 = vpow.pop %v133
    %v135 = vmul.f32 %v134, %v134
    %v136 = vmul.f32 %v135, %v134
    %v137 = vmul.f32 %v135, %v135
    %v138 = vmul.f32 %v136, %v136
    %v139 = vmul.f32 %v138, %v138
    %v140 = vmul.f32 %v139, %v139
    %v141 = vmul.f32 %v140, %v140
    %v142 = vmul.f32 %v141, %v139
    %v143 = vadd.f32 %v136, %v137
    %v144 = vadd.f32 %v143, %v138
    %v145 = vadd.f32 %v144, %v139
    %v146 = vadd.f32 %v145, %v142
    %vm147 = vcmask 64512
    %148 = vst.msk [vmem:[#allocation6] sm:$0xff] %vm147, %v146
    // Predicated region
    $region26: #{tpu_custom_call.1} parent=1 // pred_check
      _
    $region27: #{tpu_custom_call.1} parent=1 // pred_check_branch
      %150 = sbr.rel (0) target = $region29
    $region28: #{tpu_custom_call.1} parent=1 // pred_region
      %s152 = ssub.s32 128, 128
      %153 = vsyncadd [#allocation5], %s152
      %s155 = sshll.u32 [#allocation6], 4
      %s156 = int_to_ptr.vmem [resolvable:$true] %s155
      %158 = dma.vmem_to_hbm [thread:$0]  %s156, 128, %s5, [#allocation5]
    $region29: #{tpu_custom_call.1} parent=1 // pred_fallthru
      _
    // Predicated region
    $region30: #{tpu_custom_call.1} parent=1 // pred_check
      _
    $region31: #{tpu_custom_call.1} parent=1 // pred_check_branch
      %160 = sbr.rel (0) target = $region33
    $region32: #{tpu_custom_call.1} parent=1 // pred_region
      %161 = dma.done [#allocation5], 128
    $region33: #{tpu_custom_call.1} parent=1 // pred_fallthru
      _
    %162 = vsyncpa [#allocation4], 1
    %163 = vsyncpa [#allocation5], 1

</llo_original>
